<compile_context>
chip_gen: v7x
topology: tpu7x:2x2x1
jax: 0.10.0
libtpu: 0.0.40
codegen_flags: <defaults>
</compile_context>

<pallas_src>
import jax
import jax.numpy as jnp
from jax.experimental import pallas as pl
from jax.experimental.pallas import tpu as pltpu


def make_positional_encoding(max_len: int, d_model: int) -> jnp.ndarray:
    """Replicates PositionalEncoding.__init__ (float32 table, d_model must be even)."""
    assert d_model % 2 == 0, "d_model must be even (matches 0::2 / 1::2 interleave)"
    position = jnp.arange(max_len, dtype=jnp.float32)[:, None]              # (max_len, 1)
    div_term = jnp.exp(
        jnp.arange(0, d_model, 2, dtype=jnp.float32) * (-jnp.log(10000.0) / d_model)
    )                                                                        # (d_model//2,)
    enc = jnp.zeros((max_len, d_model), dtype=jnp.float32)
    enc = enc.at[:, 0::2].set(jnp.sin(position * div_term))
    enc = enc.at[:, 1::2].set(jnp.cos(position * div_term))
    return enc                                                               # (max_len, d_model)


def _pe_add_kernel(x_ref, enc_ref, o_ref):
    # x_ref: (TB, TC) activation tile; enc_ref: (1, TC) float32 table tile.
    # Add in f32 (matches PyTorch's bf16 + f32 promotion), cast at the store.
    o_ref[...] = (x_ref[...].astype(jnp.float32) + enc_ref[...]).astype(o_ref.dtype)


def _round_down(v: int, m: int) -> int:
    return (v // m) * m


def positional_encoding_forward(x: jnp.ndarray, enc_slab: jnp.ndarray) -> jnp.ndarray:
    """x: (B, S, D); enc_slab: (1, S*D) float32 slab (precomputed / cached per S)."""
    B, S, D = x.shape
    SD = S * D
    assert enc_slab.shape == (1, SD), f"enc slab shape {enc_slab.shape} != (1, {SD})"
    itemsize = jnp.dtype(x.dtype).itemsize

    x2 = x.reshape(B, SD)

    # ---- tile selection -------------------------------------------------------
    # Sublane quantum per dtype (f32: 8, bf16: 16, int8/fp8: 32).
    row_q = 8 * max(1, 4 // itemsize)
    if B <= row_q:
        TB = B                                           # full batch axis
    else:
        TB = _round_down(min(B, 64), row_q)              # big row tiles, multiple of quantum

    # VMEM per column: x + out blocks (double-buffered, x.dtype) plus the f32 encoding
    # block whose single row pads to 8 sublanes (2 buffers).  ~10 MiB total stays well
    # under the explicit 32 MiB limit on every generation (v7x has only 64 MiB/TC of
    # physical VMEM -- do NOT scale this up assuming 128 MiB).
    budget_bytes = 10 * 1024 * 1024
    cost_per_col = itemsize * 4 * TB + 4 * 2 * 8
    col_budget = max(128, _round_down(budget_bytes // cost_per_col, 128))
    TC = SD if SD <= col_budget else col_budget

    # Guarantee enough grid steps for megacore sharding (v7x: 2 TCs) once the slab is
    # non-trivial; per-step overhead (~0.35 us) is negligible next to losing a core.
    MIN_STEPS = 8
    rows = pl.cdiv(B, TB)
    cols = pl.cdiv(SD, TC)
    if B * SD * itemsize >= (2 << 20) and rows * cols < MIN_STEPS:
        cols_needed = pl.cdiv(MIN_STEPS, rows)
        tc_cap = _round_down(SD // cols_needed, 128)
        if tc_cap >= 128:
            TC = tc_cap
            cols = pl.cdiv(SD, TC)

    # Column axis OUTER, batch axis INNER: the encoding block index (0, c) is constant
    # across the inner sweep, so Pallas skips its re-DMA.
    grid = (cols, rows)

    out2 = pl.pallas_call(
        _pe_add_kernel,
        out_shape=jax.ShapeDtypeStruct((B, SD), x.dtype),
        grid=grid,
        in_specs=[
            pl.BlockSpec((TB, TC), lambda c, r: (r, c)),   # x tile
            pl.BlockSpec((1, TC), lambda c, r: (0, c)),    # encoding tile (batch-invariant)
        ],
        out_specs=pl.BlockSpec((TB, TC), lambda c, r: (r, c)),
        input_output_aliases={0: 0},                       # reuse x's HBM buffer for output
        compiler_params=pltpu.CompilerParams(
            dimension_semantics=("parallel", "parallel"),
            vmem_limit_bytes=32 * 1024 * 1024,
        ),
    )(x2, enc_slab)

    return out2.reshape(B, S, D)


class PositionalEncoding:
    """Pallas-backed equivalent of the PyTorch module: __call__(x) = x + encoding[:, :S]."""

    def __init__(self, d_model: int, max_len: int = 5000):
        self.d_model = d_model
        self.max_len = max_len
        self.encoding = make_positional_encoding(max_len, d_model)   # (max_len, d_model) f32
        self._slab_cache = {}   # S -> (1, S*d_model) f32 slab, built once, not per call

    def _enc_slab(self, S: int) -> jnp.ndarray:
        assert S <= self.max_len, f"sequence length {S} exceeds max_len {self.max_len}"
        slab = self._slab_cache.get(S)
        if slab is None:
            slab = self.encoding[:S, :].reshape(1, S * self.d_model)
            slab = jax.block_until_ready(slab)
            self._slab_cache[S] = slab
        return slab

    def __call__(self, x: jnp.ndarray) -> jnp.ndarray:
        return positional_encoding_forward(x, self._enc_slab(x.shape[1]))


if __name__ == "__main__":
    # Small shapes consistent with the module: batch=2, seq=8, d_model=32
    B, S, D = 2, 8, 32
    MAX_LEN = 64  # stand-in for max_len=5000 at small scale

    key = jax.random.PRNGKey(0)
    x = jax.random.normal(key, (B, S, D), dtype=jnp.float32)

    pe = PositionalEncoding(D, max_len=MAX_LEN)

    # Reference computed BEFORE the kernel call (output aliases x's reshaped buffer).
    ref = x + pe.encoding[None, :S, :]

    out = pe(x)
    out = jax.block_until_ready(out)

    assert out.shape == (B, S, D)
    assert out.dtype == x.dtype
    assert jnp.allclose(out, ref, atol=1e-6), "mismatch vs reference"

    print("KERNEL_OK")
</pallas_src>

<mosaic_0001>
module attributes {stable_mosaic.version = 11 : i64} {
  func.func @_pe_add_kernel(%arg0: i32, %arg1: i32, %arg2: memref<2x256xf32, #tpu.memory_space<vmem>>, %arg3: memref<1x256xf32, #tpu.memory_space<vmem>>, %arg4: memref<2x256xf32, #tpu.memory_space<vmem>>) attributes {dimension_semantics = [#tpu.dimension_semantics<parallel>, #tpu.dimension_semantics<parallel>], iteration_bounds = array<i64: 1, 1>, scalar_prefetch = 0 : i64, scratch_operands = 0 : i64, tpu.core_type = #tpu.core_type<tc>, window_params = [{transform_indices = @transform_0, window_bounds = array<i64: 2, 256>}, {transform_indices = @transform_1, window_bounds = array<i64: 1, 256>}, {transform_indices = @transform_2, window_bounds = array<i64: 2, 256>}]} {
    %c0 = arith.constant 0 : index
    %c0_0 = arith.constant 0 : index
    %0 = vector.load %arg2[%c0, %c0_0] : memref<2x256xf32, #tpu.memory_space<vmem>>, vector<2x256xf32>
    %c0_1 = arith.constant 0 : index
    %c0_2 = arith.constant 0 : index
    %1 = vector.load %arg3[%c0_1, %c0_2] : memref<1x256xf32, #tpu.memory_space<vmem>>, vector<1x256xf32>
    %2 = vector.broadcast %1 : vector<1x256xf32> to vector<2x256xf32>
    %3 = arith.addf %0, %2 : vector<2x256xf32>
    %c0_3 = arith.constant 0 : index
    %c0_4 = arith.constant 0 : index
    %4 = vector.load %arg4[%c0_3, %c0_4] : memref<2x256xf32, #tpu.memory_space<vmem>>, vector<2x256xf32>
    tpu.vector_store %arg4[%c0_3, %c0_4], %3 {strides = array<i32>} : memref<2x256xf32, #tpu.memory_space<vmem>>, vector<2x256xf32>,
    return
  }
  func.func @transform_0(%arg0: i32, %arg1: i32) -> (i32, i32) {
    %c0_i32 = arith.constant 0 : i32
    return %arg1, %arg0 : i32, i32
  }
  func.func @transform_1(%arg0: i32, %arg1: i32) -> (i32, i32) {
    %c0_i32 = arith.constant 0 : i32
    %c0_i32_0 = arith.constant 0 : i32
    return %c0_i32, %arg0 : i32, i32
  }
  func.func @transform_2(%arg0: i32, %arg1: i32) -> (i32, i32) {
    %c0_i32 = arith.constant 0 : i32
    return %arg1, %arg0 : i32, i32
  }
}

</mosaic_0001>

<llo_original>
// kernel: tpu_custom_call.1
$region0: #{tpu_custom_call.1}
  #allocation0 [shape = 'u32[]', space=smem, size = 0x4, offset = 0x4, fixed_abs, tag = 'smem constant byte address 0x4 - core index']
  #allocation1 [shape = 'u32[144,128]{1,0:T(1,128)}', space=vmem, size = 0x12000, scoped, tag = 'internal scratch']
  %s0 = inlined_call_operand.hbm [shape: f32[2,256], index: 0, kind: input, shape index: {}, may-alias: {0,2}]
  %s1 = inlined_call_operand.vmem [shape: f32[1,256], index: 1, kind: input, shape index: {}]
  %s2 = inlined_call_operand.hbm [shape: f32[2,256], index: 2, kind: output, shape index: {}, may-alias: {0,2}]
  %s3 = sld [smem:[#allocation0]]
  $region22: #{tpu_custom_call.1} parent=0
    _
  %s5 = ssub.s32 1, %s3
  %s6 = scalar_select 0, %s5, %s3
  $region1: #{tpu_custom_call.1} parent=0
    #allocation2 [shape = 'u8[2048]{0}', space=vmem, size = 0x800, scoped, tag = 'input window, operand 0, single buffered']
    #allocation3 [shape = 's32[1]{0}', space=sflag, size = 0x4, scoped, tag = 'scoped memory for tpu_custom_call.1']
    #allocation4 [shape = 's32[1]{0}', space=sflag, size = 0x4, scoped, tag = 'scoped memory for tpu_custom_call.1']
    #allocation5 [shape = 'u8[2048]{0}', space=vmem, size = 0x800, scoped, tag = 'output window, operand 0, single buffered']
    %7 = vsyncpa [#allocation3], 0
    %8 = vsyncpa [#allocation4], 0
    // Predicated region
    $region2: #{tpu_custom_call.1} parent=1 // pred_check
      _
    $region3: #{tpu_custom_call.1} parent=1 // pred_check_branch
      %10 = sbr.rel (0) target = $region5
    $region4: #{tpu_custom_call.1} parent=1 // pred_region
      %s12 = ssub.s32 64, 64
      %13 = vsyncadd [#allocation3], %s12
      %s15 = sshll.u32 [#allocation2], 4
      %s16 = int_to_ptr.vmem [resolvable:$true] %s15
      %18 = dma.hbm_to_vmem [thread:$0]  %s0, 64, %s16, [#allocation3]
    $region5: #{tpu_custom_call.1} parent=1 // pred_fallthru
      _
    // Predicated region
    $region6: #{tpu_custom_call.1} parent=1 // pred_check
      _
    $region7: #{tpu_custom_call.1} parent=1 // pred_check_branch
      %20 = sbr.rel (0) target = $region9
    $region8: #{tpu_custom_call.1} parent=1 // pred_region
      _
    $region9: #{tpu_custom_call.1} parent=1 // pred_fallthru
      _
    // Predicated region
    $region10: #{tpu_custom_call.1} parent=1 // pred_check
      _
    $region11: #{tpu_custom_call.1} parent=1 // pred_check_branch
      %22 = sbr.rel (0) target = $region13
    $region12: #{tpu_custom_call.1} parent=1 // pred_region
      %23 = dma.done [#allocation3], 64
    $region13: #{tpu_custom_call.1} parent=1 // pred_fallthru
      _
    %v24 = vld [vmem:[#allocation2] sm:$0xf]
    %v25 = vld [vmem:[%s1] sm:$0x3]
    %v27 = vlaneseq
    %v28 = vshrl.u32 %v27, 7
    %v29 = vsub.s32 0, %v28
    %v30 = vrot.slane %v25, %v29
    %v31 = vlaneseq
    %v32 = vshrl.u32 %v31, 7
    %v33 = vsub.s32 1, %v32
    %v34 = vrot.slane %v25, %v33
    %v35 = vcombine.low %v30, %v34
    %v37 = vunpack.c.l.s4 1983009808
    %v38 = vunpack.c.0.s8 %v37
    %v39 = vlaneseq
    %v40 = vshrl.u32 %v39, 7
    %v41 = vsub.s32 %v38, %v40
    %v42 = vrot.slane %v35, %v41
    %v44 = vadd.f32 %v24, %v42
    %45 = vst [vmem:[#allocation5] sm:$0xf] %v44
    // Predicated region
    $region14: #{tpu_custom_call.1} parent=1 // pred_check
      _
    $region15: #{tpu_custom_call.1} parent=1 // pred_check_branch
      %47 = sbr.rel (0) target = $region17
    $region16: #{tpu_custom_call.1} parent=1 // pred_region
      %s49 = ssub.s32 64, 64
      %50 = vsyncadd [#allocation4], %s49
      %s52 = sshll.u32 [#allocation5], 4
      %s53 = int_to_ptr.vmem [resolvable:$true] %s52
      %55 = dma.vmem_to_hbm [thread:$0]  %s53, 64, %s2, [#allocation4]
    $region17: #{tpu_custom_call.1} parent=1 // pred_fallthru
      _
    // Predicated region
    $region18: #{tpu_custom_call.1} parent=1 // pred_check
      _
    $region19: #{tpu_custom_call.1} parent=1 // pred_check_branch
      %57 = sbr.rel (0) target = $region21
    $region20: #{tpu_custom_call.1} parent=1 // pred_region
      %58 = dma.done [#allocation4], 64
    $region21: #{tpu_custom_call.1} parent=1 // pred_fallthru
      _
    %59 = vsyncpa [#allocation3], 1
    %60 = vsyncpa [#allocation4], 1

</llo_original>
